<compile_context>
chip_gen: v5e
topology: v5e:2x2
jax: 0.10.0
libtpu: 0.0.40
codegen_flags: <defaults>
</compile_context>

<pallas_src>
import functools

import jax
import jax.numpy as jnp
from jax import lax
from jax.experimental import pallas as pl
from jax.experimental.pallas import tpu as pltpu

_CHUNK = 2048  # strip-mine width (lanes) inside a tile


def _discriminator_kernel(xT_ref, c_ref, o_ref, *, d_in, hidden, chunk, n_chunks,
                          neg_slope):
    # xT_ref: (d_in, TL)   batch on lanes (f32 or bf16)
    # c_ref : (hidden, W)  packed params: [:, :d_in] = W1^T, [:, d_in] = b1,
    #                      [:, d_in+1] = w2, [0, d_in+2] = b2
    # o_ref : (1, TL)      lane-dense output
    c = c_ref[...]
    w1T = c[:, :d_in]                      # (H, D)
    b1 = c[:, d_in:d_in + 1]               # (H, 1)
    w2 = c[:, d_in + 1:d_in + 2]           # (H, 1)
    b2 = c[0:1, d_in + 2:d_in + 3]         # (1, 1)

    def process(start):
        xc = xT_ref[:, pl.ds(start, chunk)].astype(jnp.float32)   # (D, chunk)
        # Linear 1 as D broadcast FMAs (outer products) on the VPU.
        h = jnp.broadcast_to(b1, (hidden, chunk))
        for k in range(d_in):                                      # static unroll (D=5)
            h = h + w1T[:, k:k + 1] * xc[k:k + 1, :]
        # LeakyReLU(0.2)
        h = jnp.where(h > 0, h, neg_slope * h)
        # Linear 2: cross-sublane reduce (XLU) + bias.
        z = jnp.sum(h * w2, axis=0, keepdims=True) + b2            # (1, chunk)
        # Numerically-stable sigmoid on the EUP (exp + approximate reciprocal).
        e = jnp.exp(-jnp.abs(z))
        r = pl.reciprocal(1.0 + e, approx=True)
        sig = jnp.where(z >= 0, r, 1.0 - r)
        o_ref[:, pl.ds(start, chunk)] = sig.astype(o_ref.dtype)

    if n_chunks == 1:
        process(0)
    else:
        # Strip-mine so (hidden, chunk) stays vreg-resident; unrolled for LLO visibility.
        def body(ci, carry):
            process(pl.multiple_of(ci * chunk, chunk))
            return carry
        lax.fori_loop(0, n_chunks, body, 0, unroll=True)


def classical_discriminator(x, w1, b1, w2, b2, *, lane_tile=32768,
                            input_transposed=False, lane_major_output=False):
    """Forward pass of ClassicalDiscriminator.

    x: (B, d_in) by default, or (d_in, B) if input_transposed=True (producer-fused
       transpose -> no wrapper relayout HBM pass).  f32 or bf16.
    Returns (B, 1) like the PyTorch module, or the raw lane-dense (1, B_pad) kernel
    output if lane_major_output=True (slice lazily in the consumer).
    """
    x = jnp.asarray(x)
    if input_transposed:
        d_in, B = x.shape
    else:
        B, d_in = x.shape
    w1 = jnp.asarray(w1, jnp.float32)
    hidden = w1.shape[1]

    # --- lane-tile selection ---------------------------------------------------
    # Large tiles (x payload ~0.5-1 MiB) to amortize per-grid-step cost, capped so
    # the grid still has >=4 iterations when the batch allows (v7x megacore).
    tiles4 = max(128, ((B // 4) // 128) * 128)
    TL = max(128, min(int(lane_tile), tiles4))
    if TL > _CHUNK:
        TL = (TL // _CHUNK) * _CHUNK          # keep TL a multiple of the chunk
    else:
        TL = ((TL + 127) // 128) * 128
    B_pad = pl.cdiv(B, TL) * TL
    chunk = min(_CHUNK, TL)
    n_chunks = TL // chunk

    # --- input layout ------------------------------------------------------------
    # Padding uses zeros -> padded tail lanes compute sigmoid(finite) and are dropped.
    if input_transposed:
        xT = x if B == B_pad else jnp.pad(x, ((0, 0), (0, B_pad - B)))
    else:
        # Single fused pad+transpose pass; pass input_transposed=True to remove it.
        xT = x.T if B == B_pad else jnp.pad(x.T, ((0, 0), (0, B_pad - B)))

    # --- pack the four tiny parameters into a single resident operand -------------
    W = max(8, d_in + 3)
    const = jnp.zeros((hidden, W), jnp.float32)
    const = const.at[:, :d_in].set(w1.T)
    const = const.at[:, d_in].set(jnp.asarray(b1, jnp.float32).reshape(hidden))
    const = const.at[:, d_in + 1].set(jnp.asarray(w2, jnp.float32).reshape(hidden))
    const = const.at[0, d_in + 2].set(jnp.asarray(b2, jnp.float32).reshape(()))

    kernel = functools.partial(_discriminator_kernel, d_in=d_in, hidden=hidden,
                               chunk=chunk, n_chunks=n_chunks, neg_slope=0.2)

    out = pl.pallas_call(
        kernel,
        out_shape=jax.ShapeDtypeStruct((1, B_pad), x.dtype),
        grid=(B_pad // TL,),
        in_specs=[
            pl.BlockSpec((d_in, TL), lambda i: (0, i)),    # streamed x tiles
            pl.BlockSpec((hidden, W), lambda i: (0, 0)),   # packed params (resident)
        ],
        out_specs=pl.BlockSpec((1, TL), lambda i: (0, i)),  # lane-dense stores
        compiler_params=pltpu.CompilerParams(
            dimension_semantics=("parallel",)),             # megacore sharding on v7x
    )(xT, const)

    if lane_major_output:
        return out                                  # (1, B_pad): zero post-kernel passes
    # (1, B_pad) -> (B, 1): slice + metadata-only reshape (no copy when B == B_pad).
    return out[0, :B].reshape(B, 1)


def reference(x, w1, b1, w2, b2):
    x = jnp.asarray(x, jnp.float32)
    h = x @ jnp.asarray(w1, jnp.float32) + jnp.asarray(b1, jnp.float32)
    h = jnp.where(h > 0, h, 0.2 * h)
    z = h @ jnp.asarray(w2, jnp.float32) + jnp.asarray(b2, jnp.float32)
    return jax.nn.sigmoid(z)


if __name__ == "__main__":
    key = jax.random.PRNGKey(0)
    k_x, k_w1, k_b1, k_w2, k_b2 = jax.random.split(key, 5)

    input_dim = 5
    batch = 8

    x = jax.random.normal(k_x, (batch, input_dim), dtype=jnp.float32)

    # PyTorch-style uniform(-1/sqrt(fan_in), +1/sqrt(fan_in)) init.
    bound1 = 1.0 / (input_dim ** 0.5)
    w1 = jax.random.uniform(k_w1, (input_dim, 8), minval=-bound1, maxval=bound1,
                            dtype=jnp.float32)
    b1 = jax.random.uniform(k_b1, (1, 8), minval=-bound1, maxval=bound1,
                            dtype=jnp.float32)
    bound2 = 1.0 / (8 ** 0.5)
    w2 = jax.random.uniform(k_w2, (8, 1), minval=-bound2, maxval=bound2,
                            dtype=jnp.float32)
    b2 = jax.random.uniform(k_b2, (1, 1), minval=-bound2, maxval=bound2,
                            dtype=jnp.float32)

    # 1) Small batch (single 128-lane tile, ragged tail zero-padded).
    out = jax.block_until_ready(classical_discriminator(x, w1, b1, w2, b2))
    ref = reference(x, w1, b1, w2, b2)
    assert out.shape == (batch, 1), out.shape
    assert jnp.allclose(out, ref, atol=2e-3, rtol=2e-3), (out, ref)

    # 2) Ragged multi-tile batch exercising the pipelined "parallel" grid.
    big_b = 1000
    xb = jax.random.normal(jax.random.PRNGKey(1), (big_b, input_dim),
                           dtype=jnp.float32)
    out_b = jax.block_until_ready(classical_discriminator(xb, w1, b1, w2, b2))
    ref_b = reference(xb, w1, b1, w2, b2)
    assert out_b.shape == (big_b, 1), out_b.shape
    assert jnp.allclose(out_b, ref_b, atol=2e-3, rtol=2e-3)

    # 3) Zero-wrapper-pass path: producer supplies (D, B), lane-dense output consumed
    #    directly.  B=16384 -> TL=4096, 4 grid steps, 2 strip-mined chunks per tile.
    bt = 16384
    xt = jax.random.normal(jax.random.PRNGKey(2), (bt, input_dim), dtype=jnp.float32)
    out_t = jax.block_until_ready(
        classical_discriminator(xt.T, w1, b1, w2, b2,
                                input_transposed=True, lane_major_output=True))
    ref_t = reference(xt, w1, b1, w2, b2)
    assert out_t.shape == (1, bt), out_t.shape
    assert jnp.allclose(out_t[0], ref_t[:, 0], atol=2e-3, rtol=2e-3)

    # 4) bf16 input path (HBM input read halves; f32 arithmetic inside the kernel).
    bh = 256
    xh = jax.random.normal(jax.random.PRNGKey(3), (bh, input_dim), dtype=jnp.float32)
    xh_bf16 = xh.astype(jnp.bfloat16)
    out_h = jax.block_until_ready(classical_discriminator(xh_bf16, w1, b1, w2, b2))
    ref_h = reference(xh_bf16.astype(jnp.float32), w1, b1, w2, b2)
    assert out_h.shape == (bh, 1), out_h.shape
    assert jnp.allclose(out_h.astype(jnp.float32), ref_h, atol=1e-2, rtol=1e-2)

    print("KERNEL_OK")
</pallas_src>

<mosaic_0001>
module attributes {stable_mosaic.version = 11 : i64} {
  func.func @_discriminator_kernel(%arg0: i32, %arg1: memref<5x128xf32, #tpu.memory_space<vmem>>, %arg2: memref<8x8xf32, #tpu.memory_space<vmem>>, %arg3: memref<1x128xf32, #tpu.memory_space<vmem>>) attributes {dimension_semantics = [#tpu.dimension_semantics<parallel>], iteration_bounds = array<i64: 1>, scalar_prefetch = 0 : i64, scratch_operands = 0 : i64, tpu.core_type = #tpu.core_type<tc>, window_params = [{transform_indices = @transform_0, window_bounds = array<i64: 5, 128>}, {pipeline_mode = #tpu.pipeline_mode<synchronous>, transform_indices = @transform_1, window_bounds = array<i64: 8, 8>}, {transform_indices = @transform_2, window_bounds = array<i64: 1, 128>}]} {
    %c0 = arith.constant 0 : index
    %c0_0 = arith.constant 0 : index
    %0 = vector.load %arg2[%c0, %c0_0] : memref<8x8xf32, #tpu.memory_space<vmem>>, vector<8x8xf32>
    %1 = vector.extract_strided_slice %0 {offsets = [0, 0], sizes = [8, 5], strides = [1, 1]} : vector<8x8xf32> to vector<8x5xf32>
    %2 = vector.extract_strided_slice %0 {offsets = [0, 5], sizes = [8, 1], strides = [1, 1]} : vector<8x8xf32> to vector<8x1xf32>
    %3 = vector.extract_strided_slice %0 {offsets = [0, 6], sizes = [8, 1], strides = [1, 1]} : vector<8x8xf32> to vector<8x1xf32>
    %4 = vector.extract_strided_slice %0 {offsets = [0, 7], sizes = [1, 1], strides = [1, 1]} : vector<8x8xf32> to vector<1x1xf32>
    %c0_1 = arith.constant 0 : index
    %c0_2 = arith.constant 0 : index
    %5 = vector.load %arg1[%c0_1, %c0_2] : memref<5x128xf32, #tpu.memory_space<vmem>>, vector<5x128xf32>
    %6 = vector.shape_cast %2 : vector<8x1xf32> to vector<8x1xf32>
    %7 = vector.broadcast %6 : vector<8x1xf32> to vector<8x128xf32>
    %8 = vector.extract_strided_slice %1 {offsets = [0, 0], sizes = [8, 1], strides = [1, 1]} : vector<8x5xf32> to vector<8x1xf32>
    %9 = vector.extract_strided_slice %5 {offsets = [0, 0], sizes = [1, 128], strides = [1, 1]} : vector<5x128xf32> to vector<1x128xf32>
    %10 = vector.broadcast %8 : vector<8x1xf32> to vector<8x128xf32>
    %11 = vector.broadcast %9 : vector<1x128xf32> to vector<8x128xf32>
    %12 = arith.mulf %10, %11 : vector<8x128xf32>
    %13 = arith.addf %7, %12 : vector<8x128xf32>
    %14 = vector.extract_strided_slice %1 {offsets = [0, 1], sizes = [8, 1], strides = [1, 1]} : vector<8x5xf32> to vector<8x1xf32>
    %15 = vector.extract_strided_slice %5 {offsets = [1, 0], sizes = [1, 128], strides = [1, 1]} : vector<5x128xf32> to vector<1x128xf32>
    %16 = vector.broadcast %14 : vector<8x1xf32> to vector<8x128xf32>
    %17 = vector.broadcast %15 : vector<1x128xf32> to vector<8x128xf32>
    %18 = arith.mulf %16, %17 : vector<8x128xf32>
    %19 = arith.addf %13, %18 : vector<8x128xf32>
    %20 = vector.extract_strided_slice %1 {offsets = [0, 2], sizes = [8, 1], strides = [1, 1]} : vector<8x5xf32> to vector<8x1xf32>
    %21 = vector.extract_strided_slice %5 {offsets = [2, 0], sizes = [1, 128], strides = [1, 1]} : vector<5x128xf32> to vector<1x128xf32>
    %22 = vector.broadcast %20 : vector<8x1xf32> to vector<8x128xf32>
    %23 = vector.broadcast %21 : vector<1x128xf32> to vector<8x128xf32>
    %24 = arith.mulf %22, %23 : vector<8x128xf32>
    %25 = arith.addf %19, %24 : vector<8x128xf32>
    %26 = vector.extract_strided_slice %1 {offsets = [0, 3], sizes = [8, 1], strides = [1, 1]} : vector<8x5xf32> to vector<8x1xf32>
    %27 = vector.extract_strided_slice %5 {offsets = [3, 0], sizes = [1, 128], strides = [1, 1]} : vector<5x128xf32> to vector<1x128xf32>
    %28 = vector.broadcast %26 : vector<8x1xf32> to vector<8x128xf32>
    %29 = vector.broadcast %27 : vector<1x128xf32> to vector<8x128xf32>
    %30 = arith.mulf %28, %29 : vector<8x128xf32>
    %31 = arith.addf %25, %30 : vector<8x128xf32>
    %32 = vector.extract_strided_slice %1 {offsets = [0, 4], sizes = [8, 1], strides = [1, 1]} : vector<8x5xf32> to vector<8x1xf32>
    %33 = vector.extract_strided_slice %5 {offsets = [4, 0], sizes = [1, 128], strides = [1, 1]} : vector<5x128xf32> to vector<1x128xf32>
    %34 = vector.broadcast %32 : vector<8x1xf32> to vector<8x128xf32>
    %35 = vector.broadcast %33 : vector<1x128xf32> to vector<8x128xf32>
    %36 = arith.mulf %34, %35 : vector<8x128xf32>
    %37 = arith.addf %31, %36 : vector<8x128xf32>
    %cst = arith.constant 0.000000e+00 : f32
    %38 = vector.broadcast %cst : f32 to vector<8x128xf32>
    %39 = arith.cmpf ogt, %37, %38 : vector<8x128xf32>
    %cst_3 = arith.constant 2.000000e-01 : f32
    %40 = vector.broadcast %cst_3 : f32 to vector<8x128xf32>
    %41 = arith.mulf %40, %37 : vector<8x128xf32>
    %42 = arith.select %39, %37, %41 : vector<8x128xi1>, vector<8x128xf32>
    %43 = vector.broadcast %3 : vector<8x1xf32> to vector<8x128xf32>
    %44 = arith.mulf %42, %43 : vector<8x128xf32>
    %cst_4 = arith.constant dense<0.000000e+00> : vector<128xf32>
    %45 = vector.multi_reduction <add>, %44, %cst_4 [0] : vector<8x128xf32> to vector<128xf32>
    %46 = vector.shape_cast %45 : vector<128xf32> to vector<1x128xf32>
    %47 = vector.broadcast %4 : vector<1x1xf32> to vector<1x128xf32>
    %48 = arith.addf %46, %47 : vector<1x128xf32>
    %49 = math.absf %48 : vector<1x128xf32>
    %cst_5 = arith.constant 0.000000e+00 : f32
    %50 = vector.broadcast %cst_5 : f32 to vector<1x128xf32>
    %51 = arith.subf %50, %49 : vector<1x128xf32>
    %52 = math.exp %51 : vector<1x128xf32>
    %cst_6 = arith.constant 1.000000e+00 : f32
    %53 = vector.broadcast %cst_6 : f32 to vector<1x128xf32>
    %54 = arith.addf %53, %52 : vector<1x128xf32>
    %55 = tpu.reciprocal %54 {approx = true} : vector<1x128xf32> -> vector<1x128xf32>
    %cst_7 = arith.constant 0.000000e+00 : f32
    %56 = vector.broadcast %cst_7 : f32 to vector<1x128xf32>
    %57 = arith.cmpf oge, %48, %56 : vector<1x128xf32>
    %cst_8 = arith.constant 1.000000e+00 : f32
    %58 = vector.broadcast %cst_8 : f32 to vector<1x128xf32>
    %59 = arith.subf %58, %55 : vector<1x128xf32>
    %60 = arith.select %57, %55, %59 : vector<1x128xi1>, vector<1x128xf32>
    %c0_9 = arith.constant 0 : index
    %c0_10 = arith.constant 0 : index
    %61 = vector.load %arg3[%c0_9, %c0_10] : memref<1x128xf32, #tpu.memory_space<vmem>>, vector<1x128xf32>
    tpu.vector_store %arg3[%c0_9, %c0_10], %60 {strides = array<i32>} : memref<1x128xf32, #tpu.memory_space<vmem>>, vector<1x128xf32>,
    return
  }
  func.func @transform_0(%arg0: i32) -> (i32, i32) {
    %c0_i32 = arith.constant 0 : i32
    %c0_i32_0 = arith.constant 0 : i32
    return %c0_i32, %arg0 : i32, i32
  }
  func.func @transform_1(%arg0: i32) -> (i32, i32) {
    %c0_i32 = arith.constant 0 : i32
    %c0_i32_0 = arith.constant 0 : i32
    %c0_i32_1 = arith.constant 0 : i32
    return %c0_i32, %c0_i32_0 : i32, i32
  }
  func.func @transform_2(%arg0: i32) -> (i32, i32) {
    %c0_i32 = arith.constant 0 : i32
    %c0_i32_0 = arith.constant 0 : i32
    return %c0_i32, %arg0 : i32, i32
  }
}

</mosaic_0001>

<llo_original>
// kernel: tpu_custom_call.1
$region0: #{tpu_custom_call.1}
  #allocation0 [shape = 'u32[]', space=smem, size = 0x4, offset = 0x4, fixed_abs, tag = 'smem constant byte address 0x4 - core index']
  #allocation1 [shape = 'u32[72,128]{1,0:T(1,128)}', space=vmem, size = 0x9000, scoped, tag = 'internal scratch']
  %s0 = inlined_call_operand.hbm [shape: f32[5,128], index: 0, kind: input, shape index: {}]
  %s1 = inlined_call_operand.hbm [shape: f32[8,8], index: 1, kind: input, shape index: {}]
  %s2 = inlined_call_operand.hbm [shape: f32[1,128], index: 2, kind: output, shape index: {}]
  %s3 = sld [smem:[#allocation0]]
  $region26: #{tpu_custom_call.1} parent=0
    _
  %s5 = ssub.s32 1, %s3
  %s6 = scalar_select 0, %s5, %s3
  $region1: #{tpu_custom_call.1} parent=0
    #allocation2 [shape = 'u8[4096]{0}', space=vmem, size = 0x1000, scoped, tag = 'input window, operand 0, single buffered']
    #allocation3 [shape = 's32[1]{0}', space=sflag, size = 0x4, scoped, tag = 'scoped memory for tpu_custom_call.1']
    #allocation4 [shape = 's32[1]{0}', space=sflag, size = 0x4, scoped, tag = 'scoped memory for tpu_custom_call.1']
    #allocation5 [shape = 'u8[4096]{0}', space=vmem, size = 0x1000, scoped, tag = 'input window, operand 1, single buffered']
    #allocation6 [shape = 's32[1]{0}', space=sflag, size = 0x4, scoped, tag = 'scoped memory for tpu_custom_call.1']
    #allocation7 [shape = 'u8[512]{0}', space=vmem, size = 0x400, scoped, tag = 'output window, operand 0, single buffered']
    %7 = vsyncpa [#allocation3], 0
    %8 = vsyncpa [#allocation6], 0
    %9 = vsyncpa [#allocation4], 0
    // Predicated region
    $region2: #{tpu_custom_call.1} parent=1 // pred_check
      _
    $region3: #{tpu_custom_call.1} parent=1 // pred_check_branch
      %11 = sbr.rel (0) target = $region5
    $region4: #{tpu_custom_call.1} parent=1 // pred_region
      %13 = vsyncadd [#allocation3], 0
      %s15 = sshll.u32 %s0, 4
      %s16 = int_to_ptr.hbm [resolvable:$true] %s15
      %s17 = sshll.u32 [#allocation2], 4
      %s18 = int_to_ptr.vmem [resolvable:$true] %s17
      %20 = dma.hbm_to_vmem [thread:$0]  %s16, 128, %s18, [#allocation3]
    $region5: #{tpu_custom_call.1} parent=1 // pred_fallthru
      _
    // Predicated region
    $region6: #{tpu_custom_call.1} parent=1 // pred_check
      _
    $region7: #{tpu_custom_call.1} parent=1 // pred_check_branch
      %22 = sbr.rel (0) target = $region9
    $region8: #{tpu_custom_call.1} parent=1 // pred_region
      %24 = vsyncadd [#allocation6], 0
      %s26 = sshll.u32 %s1, 4
      %s27 = int_to_ptr.hbm [resolvable:$true] %s26
      %s28 = sshll.u32 [#allocation5], 4
      %s29 = int_to_ptr.vmem [resolvable:$true] %s28
      %31 = dma.hbm_to_vmem [thread:$0]  %s27, 128, %s29, [#allocation6]
    $region9: #{tpu_custom_call.1} parent=1 // pred_fallthru
      _
    // Predicated region
    $region10: #{tpu_custom_call.1} parent=1 // pred_check
      _
    $region11: #{tpu_custom_call.1} parent=1 // pred_check_branch
      %33 = sbr.rel (0) target = $region13
    $region12: #{tpu_custom_call.1} parent=1 // pred_region
      %35 = dma.done [#allocation3], 128
    $region13: #{tpu_custom_call.1} parent=1 // pred_fallthru
      _
    // Predicated region
    $region14: #{tpu_custom_call.1} parent=1 // pred_check
      _
    $region15: #{tpu_custom_call.1} parent=1 // pred_check_branch
      %37 = sbr.rel (0) target = $region17
    $region16: #{tpu_custom_call.1} parent=1 // pred_region
      %39 = dma.done [#allocation6], 128
    $region17: #{tpu_custom_call.1} parent=1 // pred_fallthru
      _
    %v40 = vld [vmem:[#allocation5] sm:$0xff]
    %v41 = vld [vmem:[#allocation2] sm:$0x1f]
    %43 = vset.pattern.permute.xlu0 5
    %44 = vperm.xlu0 %43, %v40
    %v45 = vpop.permute.xlu0 %44
    %47 = vset.pattern.permute.xlu0 0
    %48 = vperm.xlu0 %47, %v40
    %v49 = vpop.permute.xlu0 %48
    %v51 = vperm.slane %v41, 0
    %v52 = vmul.f32 %v49, %v51
    %v53 = vadd.f32 %v45, %v52
    %54 = vset.pattern.permute.xlu0 1
    %55 = vperm.xlu0 %54, %v40
    %v56 = vpop.permute.xlu0 %55
    %v58 = vperm.slane %v41, 1
    %v59 = vmul.f32 %v56, %v58
    %v60 = vadd.f32 %v53, %v59
    %61 = vset.pattern.permute.xlu0 2
    %62 = vperm.xlu0 %61, %v40
    %v63 = vpop.permute.xlu0 %62
    %v65 = vperm.slane %v41, 2
    %v66 = vmul.f32 %v63, %v65
    %v67 = vadd.f32 %v60, %v66
    %68 = vset.pattern.permute.xlu0 3
    %69 = vperm.xlu0 %68, %v40
    %v70 = vpop.permute.xlu0 %69
    %v72 = vperm.slane %v41, 3
    %v73 = vmul.f32 %v70, %v72
    %v74 = vadd.f32 %v67, %v73
    %75 = vset.pattern.permute.xlu0 4
    %76 = vperm.xlu0 %75, %v40
    %v77 = vpop.permute.xlu0 %76
    %v79 = vperm.slane %v41, 4
    %v80 = vmul.f32 %v77, %v79
    %v81 = vadd.f32 %v74, %v80
    %vm82 = vcmp.gt.f32.partialorder %v81, 0.0
    %v83 = vmul.f32 %v81, 0.2
    %v84 = vsel %vm82, %v81, %v83
    %85 = vset.pattern.permute.xlu0 6
    %86 = vperm.xlu0 %85, %v40
    %v87 = vpop.permute.xlu0 %86
    %v89 = vmul.f32 %v84, %v87
    %v90 = vrot.slane %v89, 4
    %v91 = vadd.f32 %v89, %v90
    %v92 = vrot.slane %v91, 2
    %v93 = vadd.f32 %v91, %v92
    %v94 = vrot.slane %v93, 1
    %v95 = vadd.f32 %v93, %v94
    %96 = vset.pattern.permute.xlu0 7
    %97 = vperm.xlu0 %96, %v40
    %v98 = vpop.permute.xlu0 %97
    %v100 = vadd.f32 %v95, %v98
    %v101 = vand.u32 2147483647, %v100
    %v102 = vsub.f32 0.0, %v101
    %v103 = vmul.f32 %v102, 1.442695
    %v104 = vpow.pop %v103
    %v105 = vadd.f32 %v104, 1.0
    %v106 = vrcp.pop %v105
    %vm107 = vcmp.ge.f32.partialorder %v100, 0.0
    %v108 = vsub.f32 1.0, %v106
    %v109 = vsel %vm107, %v106, %v108
    %110 = vst [vmem:[#allocation7] sm:$0x1] %v109
    // Predicated region
    $region18: #{tpu_custom_call.1} parent=1 // pred_check
      _
    $region19: #{tpu_custom_call.1} parent=1 // pred_check_branch
      %112 = sbr.rel (0) target = $region21
    $region20: #{tpu_custom_call.1} parent=1 // pred_region
      %114 = vsyncadd [#allocation4], 0
      %s116 = sshll.u32 [#allocation7], 4
      %s117 = int_to_ptr.vmem [resolvable:$true] %s116
      %s118 = sshll.u32 %s2, 4
      %s119 = int_to_ptr.hbm [resolvable:$true] %s118
      %121 = dma.vmem_to_hbm [thread:$0]  %s117, 16, %s119, [#allocation4]
    $region21: #{tpu_custom_call.1} parent=1 // pred_fallthru
      _
    // Predicated region
    $region22: #{tpu_custom_call.1} parent=1 // pred_check
      _
    $region23: #{tpu_custom_call.1} parent=1 // pred_check_branch
      %123 = sbr.rel (0) target = $region25
    $region24: #{tpu_custom_call.1} parent=1 // pred_region
      %125 = dma.done [#allocation4], 16
    $region25: #{tpu_custom_call.1} parent=1 // pred_fallthru
      _
    %126 = vsyncpa [#allocation3], 1
    %127 = vsyncpa [#allocation6], 1
    %128 = vsyncpa [#allocation4], 1

</llo_original>
